<compile_context>
chip_gen: v6e
topology: v6e:2x2x1
jax: 0.10.0
libtpu: 0.0.40
codegen_flags: <defaults>
</compile_context>

<pallas_src>
import functools

import jax
import jax.numpy as jnp
from jax.experimental import pallas as pl
from jax.experimental.pallas import tpu as pltpu

CRITIC_HIDDEN_1 = 128
CRITIC_HIDDEN_2 = 128
_H = CRITIC_HIDDEN_2          # per-head width of the fused hidden slab
_FUSED = 2 * _H               # 256 fused lanes (both heads)


def _twin_q_kernel(s_ref, a_ref,
                   w1s_ref, w1a_ref, b1_ref,
                   w2_ref, b2_ref,
                   w3_ref, b3_ref,
                   q_ref):
    # Layer 1 (both heads fused, concat folded into two accumulating dots):
    #   h1 = [state | action] @ W1_fused + b1_fused          -> (TB, 256)
    h1 = jnp.dot(s_ref[...], w1s_ref[...], preferred_element_type=jnp.float32)
    h1 = h1 + jnp.dot(a_ref[...], w1a_ref[...],
                      preferred_element_type=jnp.float32)
    h1 = jnp.maximum(h1 + b1_ref[...], 0.0)

    # Layer 2 (block-diagonal fused W2, one full-width 256x256 matmul):
    h2 = jnp.dot(h1, w2_ref[...], preferred_element_type=jnp.float32)
    h2 = jnp.maximum(h2 + b2_ref[...], 0.0)                  # (TB, 256)

    # Output layer: single elementwise multiply, then one lane reduction per
    # 128-lane half (XLU work, avoids two degenerate (128, 1) matmuls).
    prod = h2 * w3_ref[...]                                   # (TB, 256)
    q1 = jnp.sum(prod[:, :_H], axis=1, keepdims=True)         # (TB, 1)
    q2 = jnp.sum(prod[:, _H:], axis=1, keepdims=True)         # (TB, 1)
    q_ref[...] = jnp.concatenate([q1, q2], axis=1) + b3_ref[...]   # (TB, 2)


@functools.partial(jax.jit, static_argnames=("tile_b",))
def value_network_forward(state, action, fused_params, *, tile_b=512):
    """Pallas equivalent of ValueNetwork.forward -> (q1_value, q2_value).

    fused_params: dict with keys w1_state, w1_action, b1, w2, b2, w3, b3
                  (see fuse_params / init_params).
    tile_b: batch tile (must be a multiple of 8; only used when B > tile_b).
    """
    B, S = state.shape
    A = action.shape[1]

    if B <= tile_b:
        tb = B                       # single tile == full batch (always legal)
    else:
        tb = tile_b                  # multiple of 8 -> satisfies (8,128) rule

    b_pad = ((B + tb - 1) // tb) * tb
    if b_pad != B:
        pad = b_pad - B
        state = jnp.pad(state, ((0, pad), (0, 0)))
        action = jnp.pad(action, ((0, pad), (0, 0)))
    num_tiles = b_pad // tb

    p = fused_params
    w1s, w1a, b1 = p["w1_state"], p["w1_action"], p["b1"]
    w2, b2, w3, b3 = p["w2"], p["b2"], p["w3"], p["b3"]

    def const_spec(arr):
        # Weights / biases stay VMEM-resident across all batch tiles.
        return pl.BlockSpec(arr.shape, lambda i: (0,) * arr.ndim)

    d = S + A
    flops = 2.0 * b_pad * (d * _FUSED + _FUSED * _FUSED + _FUSED)
    bytes_accessed = 4 * (
        b_pad * (S + A + 2)
        + d * _FUSED + _FUSED          # W1 + b1
        + _FUSED * _FUSED + _FUSED     # W2 + b2
        + _FUSED + 2                   # w3 + b3
    )

    q = pl.pallas_call(
        _twin_q_kernel,
        out_shape=jax.ShapeDtypeStruct((b_pad, 2), jnp.float32),
        grid=(num_tiles,),
        in_specs=[
            pl.BlockSpec((tb, S), lambda i: (i, 0)),   # state tile
            pl.BlockSpec((tb, A), lambda i: (i, 0)),   # action tile
            const_spec(w1s), const_spec(w1a), const_spec(b1),
            const_spec(w2), const_spec(b2),
            const_spec(w3), const_spec(b3),
        ],
        out_specs=pl.BlockSpec((tb, 2), lambda i: (i, 0)),
        compiler_params=pltpu.CompilerParams(
            dimension_semantics=("parallel",)),
        cost_estimate=pl.CostEstimate(
            flops=int(flops), transcendentals=0,
            bytes_accessed=int(bytes_accessed)),
    )(state, action, w1s, w1a, b1, w2, b2, w3, b3)

    q = q[:B]
    return q[:, 0:1], q[:, 1:2]


# ----------------------------------------------------------------------------
# Parameter construction (matches the PyTorch module's _initialize_parameters:
# U(-0.1, 0.1) weights, zero biases). Per-head params mirror the nn.Linear
# layout (stored transposed as (in, out)); fuse_params builds the fused layout
# the kernel consumes (done once, outside the hot path).
# ----------------------------------------------------------------------------
def init_params(key, state_dim, action_dim):
    d = state_dim + action_dim
    keys = jax.random.split(key, 6)

    def uw(k, shape):
        return jax.random.uniform(k, shape, jnp.float32, minval=-0.1, maxval=0.1)

    return {
        "q1_w1": uw(keys[0], (d, CRITIC_HIDDEN_1)),
        "q1_b1": jnp.zeros((CRITIC_HIDDEN_1,), jnp.float32),
        "q1_w2": uw(keys[1], (CRITIC_HIDDEN_1, CRITIC_HIDDEN_2)),
        "q1_b2": jnp.zeros((CRITIC_HIDDEN_2,), jnp.float32),
        "q1_w3": uw(keys[2], (CRITIC_HIDDEN_2,)),   # (H2,) output-layer row
        "q1_b3": jnp.zeros((1,), jnp.float32),
        "q2_w1": uw(keys[3], (d, CRITIC_HIDDEN_1)),
        "q2_b1": jnp.zeros((CRITIC_HIDDEN_1,), jnp.float32),
        "q2_w2": uw(keys[4], (CRITIC_HIDDEN_1, CRITIC_HIDDEN_2)),
        "q2_b2": jnp.zeros((CRITIC_HIDDEN_2,), jnp.float32),
        "q2_w3": uw(keys[5], (CRITIC_HIDDEN_2,)),
        "q2_b3": jnp.zeros((1,), jnp.float32),
    }


def fuse_params(p, state_dim, action_dim):
    """Build the fused parameter layout used by the Pallas kernel."""
    h1, h2 = CRITIC_HIDDEN_1, CRITIC_HIDDEN_2
    w1_fused = jnp.concatenate([p["q1_w1"], p["q2_w1"]], axis=1)      # (D, 256)
    w2_fused = jnp.zeros((2 * h1, 2 * h2), jnp.float32)
    w2_fused = w2_fused.at[:h1, :h2].set(p["q1_w2"])
    w2_fused = w2_fused.at[h1:, h2:].set(p["q2_w2"])                  # block-diag
    return {
        "w1_state": w1_fused[:state_dim],                             # (S, 256)
        "w1_action": w1_fused[state_dim:],                            # (A, 256)
        "b1": jnp.concatenate([p["q1_b1"], p["q2_b1"]])[None, :],     # (1, 256)
        "w2": w2_fused,                                               # (256, 256)
        "b2": jnp.concatenate([p["q1_b2"], p["q2_b2"]])[None, :],     # (1, 256)
        "w3": jnp.concatenate([p["q1_w3"], p["q2_w3"]])[None, :],     # (1, 256)
        "b3": jnp.concatenate([p["q1_b3"], p["q2_b3"]])[None, :],     # (1, 2)
    }


def _reference_forward(state, action, p):
    """Pure-JAX reference (mirrors the PyTorch forward) for sanity checking."""
    sa = jnp.concatenate([state, action], axis=1)

    def head(w1, b1, w2, b2, w3, b3):
        h1 = jnp.maximum(sa @ w1 + b1[None, :], 0.0)
        h2 = jnp.maximum(h1 @ w2 + b2[None, :], 0.0)
        return h2 @ w3[:, None] + b3[None, :]

    q1 = head(p["q1_w1"], p["q1_b1"], p["q1_w2"], p["q1_b2"],
              p["q1_w3"], p["q1_b3"])
    q2 = head(p["q2_w1"], p["q2_b1"], p["q2_w2"], p["q2_b2"],
              p["q2_w3"], p["q2_b3"])
    return q1, q2


if __name__ == "__main__":
    key = jax.random.PRNGKey(0)
    k_state, k_action, k_params, k_state2, k_action2 = jax.random.split(key, 5)

    state_dim, action_dim = 16, 8
    params = init_params(k_params, state_dim, action_dim)
    fused = fuse_params(params, state_dim, action_dim)

    # --- small batch, single tile -------------------------------------------
    batch = 8
    state = jax.random.normal(k_state, (batch, state_dim), jnp.float32)
    action = jax.random.normal(k_action, (batch, action_dim), jnp.float32)

    q1, q2 = value_network_forward(state, action, fused)
    jax.block_until_ready((q1, q2))
    q1_ref, q2_ref = _reference_forward(state, action, params)
    assert q1.shape == (batch, 1) and q2.shape == (batch, 1)
    assert jnp.allclose(q1, q1_ref, atol=1e-4), "q1 mismatch vs reference"
    assert jnp.allclose(q2, q2_ref, atol=1e-4), "q2 mismatch vs reference"

    # --- slightly larger batch exercising the batch grid (2 tiles of 8) -----
    batch2 = 16
    state2 = jax.random.normal(k_state2, (batch2, state_dim), jnp.float32)
    action2 = jax.random.normal(k_action2, (batch2, action_dim), jnp.float32)

    q1b, q2b = value_network_forward(state2, action2, fused, tile_b=8)
    jax.block_until_ready((q1b, q2b))
    q1b_ref, q2b_ref = _reference_forward(state2, action2, params)
    assert jnp.allclose(q1b, q1b_ref, atol=1e-4), "q1 (tiled) mismatch"
    assert jnp.allclose(q2b, q2b_ref, atol=1e-4), "q2 (tiled) mismatch"

    print("KERNEL_OK")
</pallas_src>

<mosaic_0001>
module attributes {stable_mosaic.version = 11 : i64} {
  func.func @_twin_q_kernel(%arg0: i32, %arg1: memref<8x16xf32, #tpu.memory_space<vmem>>, %arg2: memref<8x8xf32, #tpu.memory_space<vmem>>, %arg3: memref<16x256xf32, #tpu.memory_space<vmem>>, %arg4: memref<8x256xf32, #tpu.memory_space<vmem>>, %arg5: memref<1x256xf32, #tpu.memory_space<vmem>>, %arg6: memref<256x256xf32, #tpu.memory_space<vmem>>, %arg7: memref<1x256xf32, #tpu.memory_space<vmem>>, %arg8: memref<1x256xf32, #tpu.memory_space<vmem>>, %arg9: memref<1x2xf32, #tpu.memory_space<vmem>>, %arg10: memref<8x2xf32, #tpu.memory_space<vmem>>) attributes {dimension_semantics = [#tpu.dimension_semantics<parallel>], iteration_bounds = array<i64: 1>, scalar_prefetch = 0 : i64, scratch_operands = 0 : i64, tpu.core_type = #tpu.core_type<tc>, window_params = [{transform_indices = @transform_0, window_bounds = array<i64: 8, 16>}, {transform_indices = @transform_1, window_bounds = array<i64: 8, 8>}, {pipeline_mode = #tpu.pipeline_mode<synchronous>, transform_indices = @transform_2, window_bounds = array<i64: 16, 256>}, {pipeline_mode = #tpu.pipeline_mode<synchronous>, transform_indices = @transform_3, window_bounds = array<i64: 8, 256>}, {pipeline_mode = #tpu.pipeline_mode<synchronous>, transform_indices = @transform_4, window_bounds = array<i64: 1, 256>}, {pipeline_mode = #tpu.pipeline_mode<synchronous>, transform_indices = @transform_5, window_bounds = array<i64: 256, 256>}, {pipeline_mode = #tpu.pipeline_mode<synchronous>, transform_indices = @transform_6, window_bounds = array<i64: 1, 256>}, {pipeline_mode = #tpu.pipeline_mode<synchronous>, transform_indices = @transform_7, window_bounds = array<i64: 1, 256>}, {pipeline_mode = #tpu.pipeline_mode<synchronous>, transform_indices = @transform_8, window_bounds = array<i64: 1, 2>}, {transform_indices = @transform_9, window_bounds = array<i64: 8, 2>}]} {
    %c0 = arith.constant 0 : index
    %c0_0 = arith.constant 0 : index
    %0 = vector.load %arg1[%c0, %c0_0] : memref<8x16xf32, #tpu.memory_space<vmem>>, vector<8x16xf32>
    %c0_1 = arith.constant 0 : index
    %c0_2 = arith.constant 0 : index
    %1 = vector.load %arg3[%c0_1, %c0_2] : memref<16x256xf32, #tpu.memory_space<vmem>>, vector<16x256xf32>
    %cst = arith.constant dense<0.000000e+00> : vector<8x256xf32>
    %2 = tpu.matmul %0, %1, %cst {dimension_numbers = #tpu.dot_dimension_numbers<[1], [0], [0], [1], [0, 0, 1, 1], [], []>} : vector<8x16xf32>, vector<16x256xf32>, vector<8x256xf32> -> vector<8x256xf32>
    %c0_3 = arith.constant 0 : index
    %c0_4 = arith.constant 0 : index
    %3 = vector.load %arg2[%c0_3, %c0_4] : memref<8x8xf32, #tpu.memory_space<vmem>>, vector<8x8xf32>
    %c0_5 = arith.constant 0 : index
    %c0_6 = arith.constant 0 : index
    %4 = vector.load %arg4[%c0_5, %c0_6] : memref<8x256xf32, #tpu.memory_space<vmem>>, vector<8x256xf32>
    %cst_7 = arith.constant dense<0.000000e+00> : vector<8x256xf32>
    %5 = tpu.matmul %3, %4, %cst_7 {dimension_numbers = #tpu.dot_dimension_numbers<[1], [0], [0], [1], [0, 0, 1, 1], [], []>} : vector<8x8xf32>, vector<8x256xf32>, vector<8x256xf32> -> vector<8x256xf32>
    %6 = arith.addf %2, %5 : vector<8x256xf32>
    %c0_8 = arith.constant 0 : index
    %c0_9 = arith.constant 0 : index
    %7 = vector.load %arg5[%c0_8, %c0_9] : memref<1x256xf32, #tpu.memory_space<vmem>>, vector<1x256xf32>
    %8 = vector.broadcast %7 : vector<1x256xf32> to vector<8x256xf32>
    %9 = arith.addf %6, %8 : vector<8x256xf32>
    %cst_10 = arith.constant 0.000000e+00 : f32
    %10 = vector.broadcast %cst_10 : f32 to vector<8x256xf32>
    %11 = arith.maximumf %9, %10 : vector<8x256xf32>
    %c0_11 = arith.constant 0 : index
    %c0_12 = arith.constant 0 : index
    %12 = vector.load %arg6[%c0_11, %c0_12] : memref<256x256xf32, #tpu.memory_space<vmem>>, vector<256x256xf32>
    %cst_13 = arith.constant dense<0.000000e+00> : vector<8x256xf32>
    %13 = tpu.matmul %11, %12, %cst_13 {dimension_numbers = #tpu.dot_dimension_numbers<[1], [0], [0], [1], [0, 0, 1, 1], [], []>} : vector<8x256xf32>, vector<256x256xf32>, vector<8x256xf32> -> vector<8x256xf32>
    %c0_14 = arith.constant 0 : index
    %c0_15 = arith.constant 0 : index
    %14 = vector.load %arg7[%c0_14, %c0_15] : memref<1x256xf32, #tpu.memory_space<vmem>>, vector<1x256xf32>
    %15 = vector.broadcast %14 : vector<1x256xf32> to vector<8x256xf32>
    %16 = arith.addf %13, %15 : vector<8x256xf32>
    %cst_16 = arith.constant 0.000000e+00 : f32
    %17 = vector.broadcast %cst_16 : f32 to vector<8x256xf32>
    %18 = arith.maximumf %16, %17 : vector<8x256xf32>
    %c0_17 = arith.constant 0 : index
    %c0_18 = arith.constant 0 : index
    %19 = vector.load %arg8[%c0_17, %c0_18] : memref<1x256xf32, #tpu.memory_space<vmem>>, vector<1x256xf32>
    %20 = vector.broadcast %19 : vector<1x256xf32> to vector<8x256xf32>
    %21 = arith.mulf %18, %20 : vector<8x256xf32>
    %22 = vector.extract_strided_slice %21 {offsets = [0, 0], sizes = [8, 128], strides = [1, 1]} : vector<8x256xf32> to vector<8x128xf32>
    %cst_19 = arith.constant dense<0.000000e+00> : vector<8xf32>
    %23 = vector.multi_reduction <add>, %22, %cst_19 [1] : vector<8x128xf32> to vector<8xf32>
    %24 = vector.shape_cast %23 : vector<8xf32> to vector<8x1xf32>
    %25 = vector.extract_strided_slice %21 {offsets = [0, 128], sizes = [8, 128], strides = [1, 1]} : vector<8x256xf32> to vector<8x128xf32>
    %cst_20 = arith.constant dense<0.000000e+00> : vector<8xf32>
    %26 = vector.multi_reduction <add>, %25, %cst_20 [1] : vector<8x128xf32> to vector<8xf32>
    %27 = vector.shape_cast %26 : vector<8xf32> to vector<8x1xf32>
    %28 = tpu.concatenate %24, %27 in 1 : vector<8x1xf32>, vector<8x1xf32> -> vector<8x2xf32>
    %c0_21 = arith.constant 0 : index
    %c0_22 = arith.constant 0 : index
    %29 = vector.load %arg9[%c0_21, %c0_22] : memref<1x2xf32, #tpu.memory_space<vmem>>, vector<1x2xf32>
    %30 = vector.broadcast %29 : vector<1x2xf32> to vector<8x2xf32>
    %31 = arith.addf %28, %30 : vector<8x2xf32>
    %c0_23 = arith.constant 0 : index
    %c0_24 = arith.constant 0 : index
    %32 = vector.load %arg10[%c0_23, %c0_24] : memref<8x2xf32, #tpu.memory_space<vmem>>, vector<8x2xf32>
    tpu.vector_store %arg10[%c0_23, %c0_24], %31 {strides = array<i32>} : memref<8x2xf32, #tpu.memory_space<vmem>>, vector<8x2xf32>,
    return
  }
  func.func @transform_0(%arg0: i32) -> (i32, i32) {
    %c0_i32 = arith.constant 0 : i32
    %c0_i32_0 = arith.constant 0 : i32
    return %arg0, %c0_i32 : i32, i32
  }
  func.func @transform_1(%arg0: i32) -> (i32, i32) {
    %c0_i32 = arith.constant 0 : i32
    %c0_i32_0 = arith.constant 0 : i32
    return %arg0, %c0_i32 : i32, i32
  }
  func.func @transform_2(%arg0: i32) -> (i32, i32) {
    %c0_i32 = arith.constant 0 : i32
    %c0_i32_0 = arith.constant 0 : i32
    %c0_i32_1 = arith.constant 0 : i32
    return %c0_i32, %c0_i32_0 : i32, i32
  }
  func.func @transform_3(%arg0: i32) -> (i32, i32) {
    %c0_i32 = arith.constant 0 : i32
    %c0_i32_0 = arith.constant 0 : i32
    %c0_i32_1 = arith.constant 0 : i32
    return %c0_i32, %c0_i32_0 : i32, i32
  }
  func.func @transform_4(%arg0: i32) -> (i32, i32) {
    %c0_i32 = arith.constant 0 : i32
    %c0_i32_0 = arith.constant 0 : i32
    %c0_i32_1 = arith.constant 0 : i32
    return %c0_i32, %c0_i32_0 : i32, i32
  }
  func.func @transform_5(%arg0: i32) -> (i32, i32) {
    %c0_i32 = arith.constant 0 : i32
    %c0_i32_0 = arith.constant 0 : i32
    %c0_i32_1 = arith.constant 0 : i32
    return %c0_i32, %c0_i32_0 : i32, i32
  }
  func.func @transform_6(%arg0: i32) -> (i32, i32) {
    %c0_i32 = arith.constant 0 : i32
    %c0_i32_0 = arith.constant 0 : i32
    %c0_i32_1 = arith.constant 0 : i32
    return %c0_i32, %c0_i32_0 : i32, i32
  }
  func.func @transform_7(%arg0: i32) -> (i32, i32) {
    %c0_i32 = arith.constant 0 : i32
    %c0_i32_0 = arith.constant 0 : i32
    %c0_i32_1 = arith.constant 0 : i32
    return %c0_i32, %c0_i32_0 : i32, i32
  }
  func.func @transform_8(%arg0: i32) -> (i32, i32) {
    %c0_i32 = arith.constant 0 : i32
    %c0_i32_0 = arith.constant 0 : i32
    %c0_i32_1 = arith.constant 0 : i32
    return %c0_i32, %c0_i32_0 : i32, i32
  }
  func.func @transform_9(%arg0: i32) -> (i32, i32) {
    %c0_i32 = arith.constant 0 : i32
    %c0_i32_0 = arith.constant 0 : i32
    return %arg0, %c0_i32 : i32, i32
  }
}

</mosaic_0001>

<llo_original>
// kernel: value_network_forward.1
$region0: #{value_network_forward.1}
  #allocation0 [shape = 'u32[]', space=smem, size = 0x4, offset = 0x4, fixed_abs, tag = 'smem constant byte address 0x4 - core index']
  #allocation1 [shape = 'u32[144,128]{1,0:T(1,128)}', space=vmem, size = 0x12000, scoped, tag = 'internal scratch']
  %s0 = inlined_call_operand.hbm [shape: f32[8,16], index: 0, kind: input, shape index: {}]
  %s1 = inlined_call_operand.hbm [shape: f32[8,8], index: 1, kind: input, shape index: {}]
  %s2 = inlined_call_operand.hbm [shape: f32[16,256], index: 2, kind: input, shape index: {}]
  %s3 = inlined_call_operand.hbm [shape: f32[8,256], index: 3, kind: input, shape index: {}]
  %s4 = inlined_call_operand.vmem [shape: f32[1,256], index: 4, kind: input, shape index: {}]
  %s5 = inlined_call_operand.hbm [shape: f32[256,256], index: 5, kind: input, shape index: {}]
  %s6 = inlined_call_operand.vmem [shape: f32[1,256], index: 6, kind: input, shape index: {}]
  %s7 = inlined_call_operand.vmem [shape: f32[1,256], index: 7, kind: input, shape index: {}]
  %s8 = inlined_call_operand.vmem [shape: f32[1,2], index: 8, kind: input, shape index: {}]
  %s9 = inlined_call_operand.vmem [shape: f32[8,2], index: 9, kind: output, shape index: {}]
  %s10 = sld [smem:[#allocation0]]
  $region66: #{value_network_forward.1} parent=0
    _
  %s12 = ssub.s32 1, %s10
  %s13 = scalar_select 0, %s12, %s10
  $region1: #{value_network_forward.1} parent=0
    #allocation2 [shape = 'u8[4096]{0}', space=vmem, size = 0x1000, scoped, tag = 'input window, operand 0, single buffered']
    #allocation3 [shape = 's32[1]{0}', space=sflag, size = 0x4, scoped, tag = 'scoped memory for value_network_forward.1']
    #allocation4 [shape = 'u8[4096]{0}', space=vmem, size = 0x1000, scoped, tag = 'input window, operand 1, single buffered']
    #allocation5 [shape = 's32[1]{0}', space=sflag, size = 0x4, scoped, tag = 'scoped memory for value_network_forward.1']
    #allocation6 [shape = 'u8[16384]{0}', space=vmem, size = 0x4000, scoped, tag = 'input window, operand 2, single buffered']
    #allocation7 [shape = 'u8[8192]{0}', space=vmem, size = 0x2000, scoped, tag = 'input window, operand 3, single buffered']
    #allocation8 [shape = 's32[1]{0}', space=sflag, size = 0x4, scoped, tag = 'scoped memory for value_network_forward.1']
    #allocation9 [shape = 'u8[262144]{0}', space=vmem, size = 0x40000, scoped, tag = 'input window, operand 5, single buffered']
    %14 = vsyncpa [#allocation3], 0
    %15 = vsyncpa [#allocation5], 0
    %16 = vsyncpa [#allocation8], 0
    // Predicated region
    $region2: #{value_network_forward.1} parent=1 // pred_check
      _
    $region3: #{value_network_forward.1} parent=1 // pred_check_branch
      %18 = sbr.rel (0) target = $region5
    $region4: #{value_network_forward.1} parent=1 // pred_region
      %s20 = ssub.s32 128, 128
      %21 = vsyncadd [#allocation3], %s20
      %s23 = sshll.u32 [#allocation2], 4
      %s24 = int_to_ptr.vmem [resolvable:$true] %s23
      %26 = dma.hbm_to_vmem [thread:$0]  %s0, 128, %s24, [#allocation3]
    $region5: #{value_network_forward.1} parent=1 // pred_fallthru
      _
    // Predicated region
    $region6: #{value_network_forward.1} parent=1 // pred_check
      _
    $region7: #{value_network_forward.1} parent=1 // pred_check_branch
      %28 = sbr.rel (0) target = $region9
    $region8: #{value_network_forward.1} parent=1 // pred_region
      %s30 = ssub.s32 128, 128
      %31 = vsyncadd [#allocation5], %s30
      %s33 = sshll.u32 [#allocation4], 4
      %s34 = int_to_ptr.vmem [resolvable:$true] %s33
      %36 = dma.hbm_to_vmem [thread:$0]  %s1, 128, %s34, [#allocation5]
    $region9: #{value_network_forward.1} parent=1 // pred_fallthru
      _
    // Predicated region
    $region10: #{value_network_forward.1} parent=1 // pred_check
      _
    $region11: #{value_network_forward.1} parent=1 // pred_check_branch
      %38 = sbr.rel (0) target = $region13
    $region12: #{value_network_forward.1} parent=1 // pred_region
      %s40 = ssub.s32 512, 512
      %41 = vsyncadd [#allocation5], %s40
      %s42 = sshll.u32 [#allocation6], 4
      %s43 = int_to_ptr.vmem [resolvable:$true] %s42
      %48 = dma.hbm_to_vmem [thread:$0]  %s2, 512, %s43, [#allocation5], 256, 256, 16
    $region13: #{value_network_forward.1} parent=1 // pred_fallthru
      _
    // Predicated region
    $region14: #{value_network_forward.1} parent=1 // pred_check
      _
    $region15: #{value_network_forward.1} parent=1 // pred_check_branch
      %50 = sbr.rel (0) target = $region17
    $region16: #{value_network_forward.1} parent=1 // pred_region
      %s52 = ssub.s32 256, 256
      %53 = vsyncadd [#allocation8], %s52
      %s55 = sshll.u32 [#allocation7], 4
      %s56 = int_to_ptr.vmem [resolvable:$true] %s55
      %58 = dma.hbm_to_vmem [thread:$0]  %s3, 256, %s56, [#allocation8]
    $region17: #{value_network_forward.1} parent=1 // pred_fallthru
      _
    // Predicated region
    $region18: #{value_network_forward.1} parent=1 // pred_check
      _
    $region19: #{value_network_forward.1} parent=1 // pred_check_branch
      %60 = sbr.rel (0) target = $region21
    $region20: #{value_network_forward.1} parent=1 // pred_region
      _
    $region21: #{value_network_forward.1} parent=1 // pred_fallthru
      _
    // Predicated region
    $region22: #{value_network_forward.1} parent=1 // pred_check
      _
    $region23: #{value_network_forward.1} parent=1 // pred_check_branch
      %62 = sbr.rel (0) target = $region25
    $region24: #{value_network_forward.1} parent=1 // pred_region
      %s64 = ssub.s32 8192, 8192
      %65 = vsyncadd [#allocation8], %s64
      %s66 = sshll.u32 [#allocation9], 4
      %s67 = int_to_ptr.vmem [resolvable:$true] %s66
      %72 = dma.hbm_to_vmem [thread:$0]  %s5, 8192, %s67, [#allocation8], 256, 256, 16
    $region25: #{value_network_forward.1} parent=1 // pred_fallthru
      _
    // Predicated region
    $region26: #{value_network_forward.1} parent=1 // pred_check
      _
    $region27: #{value_network_forward.1} parent=1 // pred_check_branch
      %74 = sbr.rel (0) target = $region29
    $region28: #{value_network_forward.1} parent=1 // pred_region
      _
    $region29: #{value_network_forward.1} parent=1 // pred_fallthru
      _
    // Predicated region
    $region30: #{value_network_forward.1} parent=1 // pred_check
      _
    $region31: #{value_network_forward.1} parent=1 // pred_check_branch
      %76 = sbr.rel (0) target = $region33
    $region32: #{value_network_forward.1} parent=1 // pred_region
      _
    $region33: #{value_network_forward.1} parent=1 // pred_fallthru
      _
    // Predicated region
    $region34: #{value_network_forward.1} parent=1 // pred_check
      _
    $region35: #{value_network_forward.1} parent=1 // pred_check_branch
      %78 = sbr.rel (0) target = $region37
    $region36: #{value_network_forward.1} parent=1 // pred_region
      _
    $region37: #{value_network_forward.1} parent=1 // pred_fallthru
      _
    // Predicated region
    $region38: #{value_network_forward.1} parent=1 // pred_check
      _
    $region39: #{value_network_forward.1} parent=1 // pred_check_branch
      %80 = sbr.rel (0) target = $region41
    $region40: #{value_network_forward.1} parent=1 // pred_region
      %81 = dma.done [#allocation3], 128
    $region41: #{value_network_forward.1} parent=1 // pred_fallthru
      _
    // Predicated region
    $region42: #{value_network_forward.1} parent=1 // pred_check
      _
    $region43: #{value_network_forward.1} parent=1 // pred_check_branch
      %83 = sbr.rel (0) target = $region45
    $region44: #{value_network_forward.1} parent=1 // pred_region
      %84 = dma.done [#allocation5], 128
    $region45: #{value_network_forward.1} parent=1 // pred_fallthru
      _
    // Predicated region
    $region46: #{value_network_forward.1} parent=1 // pred_check
      _
    $region47: #{value_network_forward.1} parent=1 // pred_check_branch
      %86 = sbr.rel (0) target = $region49
    $region48: #{value_network_forward.1} parent=1 // pred_region
      %87 = dma.done [#allocation5], 512
    $region49: #{value_network_forward.1} parent=1 // pred_fallthru
      _
    // Predicated region
    $region50: #{value_network_forward.1} parent=1 // pred_check
      _
    $region51: #{value_network_forward.1} parent=1 // pred_check_branch
      %89 = sbr.rel (0) target = $region53
    $region52: #{value_network_forward.1} parent=1 // pred_region
      %90 = dma.done [#allocation8], 256
    $region53: #{value_network_forward.1} parent=1 // pred_fallthru
      _
    // Predicated region
    $region54: #{value_network_forward.1} parent=1 // pred_check
      _
    $region55: #{value_network_forward.1} parent=1 // pred_check_branch
      %92 = sbr.rel (0) target = $region57
    $region56: #{value_network_forward.1} parent=1 // pred_region
      %93 = dma.done [#allocation8], 8192
    $region57: #{value_network_forward.1} parent=1 // pred_fallthru
      _
    %v94 = vld [vmem:[#allocation2] sm:$0xff]
    %v95 = vld [vmem:[#allocation6] sm:$0xff]
    %v96 = vld [vmem:[#allocation6 + $0x8] sm:$0xff]
    %v97 = vld [vmem:[#allocation6 + $0x10] sm:$0xff]
    %v98 = vld [vmem:[#allocation6 + $0x18] sm:$0xff]
    %v99 = vld [vmem:[#allocation4] sm:$0xff]
    %v100 = vld [vmem:[#allocation7] sm:$0xff]
    %v101 = vld [vmem:[#allocation7 + $0x8] sm:$0xff]
    %vm102 = vcmask 64512
    %v104 = vsel %vm102, %v99, 0
    %106 = vmatprep.subr.mxu0 0.0
    %107 = vmatpush1.msra.mxu0 0.0
    %108 = vmatprep.subr.mxu0 0.0
    %109 = vmatpush1.msra.mxu0 0.0
    %110 = vmatprep.subr.mxu0 0.0
    %111 = vmatpush1.msra.mxu0 0.0
    %112 = vmatprep.subr.mxu0 0.0
    %113 = vmatpush1.msra.mxu0 0.0
    %114 = vmatprep.subr.mxu0 0.0
    %115 = vmatpush1.msra.mxu0 0.0
    %116 = vmatprep.subr.mxu0 0.0
    %117 = vmatpush1.msra.mxu0 0.0
    %118 = vmatprep.subr.mxu0 0.0
    %119 = vmatpush1.msra.mxu0 0.0
    %120 = vmatprep.subr.mxu0 0.0
    %121 = vmatpush1.msra.mxu0 0.0
    %122 = vmatprep.subr.mxu0 0.0
    %123 = vmatpush1.msra.mxu0 0.0
    %124 = vmatprep.subr.mxu0 0.0
    %125 = vmatpush1.msra.mxu0 0.0
    %126 = vmatprep.subr.mxu0 0.0
    %127 = vmatpush1.msra.mxu0 0.0
    %128 = vmatprep.subr.mxu0 0.0
    %129 = vmatpush1.msra.mxu0 0.0
    %130 = vmatprep.subr.mxu0 0.0
    %131 = vmatpush1.msra.mxu0 0.0
    %132 = vmatprep.subr.mxu0 0.0
    %133 = vmatpush1.msra.mxu0 0.0
    %134 = vmatprep.subr.mxu0 0.0
    %135 = vmatpush1.msra.mxu0 0.0
    %136 = vmatprep.subr.mxu0 %v101
    %137 = vmatpush1.msra.mxu0 %v100
    %138 = vmatprep.subr.mxu0 0.0
    %139 = vmatpush2.msra.mxu0 0.0
    %140 = vmatprep.subr.mxu0 0.0
    %141 = vmatpush2.msra.mxu0 0.0
    %142 = vmatprep.subr.mxu0 0.0
    %143 = vmatpush2.msra.mxu0 0.0
    %144 = vmatprep.subr.mxu0 0.0
    %145 = vmatpush2.msra.mxu0 0.0
    %146 = vmatprep.subr.mxu0 0.0
    %147 = vmatpush2.msra.mxu0 0.0
    %148 = vmatprep.subr.mxu0 0.0
    %149 = vmatpush2.msra.mxu0 0.0
    %150 = vmatprep.subr.mxu0 0.0
    %151 = vmatpush2.msra.mxu0 0.0
    %152 = vmatprep.subr.mxu0 0.0
    %153 = vmatpush2.msra.mxu0 0.0
    %154 = vmatprep.subr.mxu0 0.0
    %155 = vmatpush2.msra.mxu0 0.0
    %156 = vmatprep.subr.mxu0 0.0
    %157 = vmatpush2.msra.mxu0 0.0
    %158 = vmatprep.subr.mxu0 0.0
    %159 = vmatpush2.msra.mxu0 0.0
    %160 = vmatprep.subr.mxu0 0.0
    %161 = vmatpush2.msra.mxu0 0.0
    %162 = vmatprep.subr.mxu0 0.0
    %163 = vmatpush2.msra.mxu0 0.0
    %164 = vmatprep.subr.mxu0 0.0
    %165 = vmatpush2.msra.mxu0 0.0
    %166 = vmatprep.subr.mxu0 0.0
    %167 = vmatpush2.msra.mxu0 0.0
    %168 = vmatprep.subr.mxu0 0.0
    %169 = vmatpush2.msra.mxu0 0.0
    %170 = vmatprep.mubr.f32.mxu0 0.0
    %171 = vmatmul.mubr.f32.gmra.mxu0 %v104
    %v172 = vpop.f32.mrf.mxu0
    %v173 = vadd.f32 0.0, %v172
    %v174 = vpop.f32.mrf.mxu0
    %v175 = vadd.f32 0.0, %v174
    %176 = vdwg.mxu0
    %vm177 = vcmask 130048
    %v179 = vsel %vm177, %v94, 0
    %181 = vmatprep.subr.mxu0 0.0
    %182 = vmatpush1.msra.mxu0 0.0
    %183 = vmatprep.subr.mxu0 0.0
    %184 = vmatpush1.msra.mxu0 0.0
    %185 = vmatprep.subr.mxu0 0.0
    %186 = vmatpush1.msra.mxu0 0.0
    %187 = vmatprep.subr.mxu0 0.0
    %188 = vmatpush1.msra.mxu0 0.0
    %189 = vmatprep.subr.mxu0 0.0
    %190 = vmatpush1.msra.mxu0 0.0
    %191 = vmatprep.subr.mxu0 0.0
    %192 = vmatpush1.msra.mxu0 0.0
    %193 = vmatprep.subr.mxu0 0.0
    %194 = vmatpush1.msra.mxu0 0.0
    %195 = vmatprep.subr.mxu0 0.0
    %196 = vmatpush1.msra.mxu0 0.0
    %197 = vmatprep.subr.mxu0 0.0
    %198 = vmatpush1.msra.mxu0 0.0
    %199 = vmatprep.subr.mxu0 0.0
    %200 = vmatpush1.msra.mxu0 0.0
    %201 = vmatprep.subr.mxu0 0.0
    %202 = vmatpush1.msra.mxu0 0.0
    %203 = vmatprep.subr.mxu0 0.0
    %204 = vmatpush1.msra.mxu0 0.0
    %205 = vmatprep.subr.mxu0 0.0
    %206 = vmatpush1.msra.mxu0 0.0
    %207 = vmatprep.subr.mxu0 0.0
    %208 = vmatpush1.msra.mxu0 0.0
    %209 = vmatprep.subr.mxu0 %v98
    %210 = vmatpush1.msra.mxu0 %v97
    %211 = vmatprep.subr.mxu0 %v96
    %212 = vmatpush1.msra.mxu0 %v95
    %213 = vmatprep.subr.mxu0 0.0
    %214 = vmatpush2.msra.mxu0 0.0
    %215 = vmatprep.subr.mxu0 0.0
    %216 = vmatpush2.msra.mxu0 0.0
    %217 = vmatprep.subr.mxu0 0.0
    %218 = vmatpush2.msra.mxu0 0.0
    %219 = vmatprep.subr.mxu0 0.0
    %220 = vmatpush2.msra.mxu0 0.0
    %221 = vmatprep.subr.mxu0 0.0
    %222 = vmatpush2.msra.mxu0 0.0
    %223 = vmatprep.subr.mxu0 0.0
    %224 = vmatpush2.msra.mxu0 0.0
    %225 = vmatprep.subr.mxu0 0.0
    %226 = vmatpush2.msra.mxu0 0.0
    %227 = vmatprep.subr.mxu0 0.0
    %228 = vmatpush2.msra.mxu0 0.0
    %229 = vmatprep.subr.mxu0 0.0
    %230 = vmatpush2.msra.mxu0 0.0
    %231 = vmatprep.subr.mxu0 0.0
    %232 = vmatpush2.msra.mxu0 0.0
    %233 = vmatprep.subr.mxu0 0.0
    %234 = vmatpush2.msra.mxu0 0.0
    %235 = vmatprep.subr.mxu0 0.0
    %236 = vmatpush2.msra.mxu0 0.0
    %237 = vmatprep.subr.mxu0 0.0
    %238 = vmatpush2.msra.mxu0 0.0
    %239 = vmatprep.subr.mxu0 0.0
    %240 = vmatpush2.msra.mxu0 0.0
    %241 = vmatprep.subr.mxu0 0.0
    %242 = vmatpush2.msra.mxu0 0.0
    %243 = vmatprep.subr.mxu0 0.0
    %244 = vmatpush2.msra.mxu0 0.0
    %245 = vmatprep.mubr.f32.mxu0 0.0
    %246 = vmatmul.mubr.f32.gmra.mxu0 %v179
    %v247 = vpop.f32.mrf.mxu0
    %v248 = vadd.f32 %v173, %v247
    %v249 = vpop.f32.mrf.mxu0
    %v250 = vadd.f32 %v175, %v249
    %251 = vdwg.mxu0
    %v252 = vld [vmem:[%s4] sm:$0x3]
    %v254 = vlaneseq
    %v255 = vshrl.u32 %v254, 7
    %v256 = vsub.s32 0, %v255
    %v257 = vrot.slane %v252, %v256
    %v258 = vlaneseq
    %v259 = vshrl.u32 %v258, 7
    %v260 = vsub.s32 1, %v259
    %v261 = vrot.slane %v252, %v260
    %v264 = vadd.f32 %v248, %v257
    %v265 = vadd.f32 %v250, %v261
    %v266 = vmax.f32 %v264, 0.0
    %v267 = vmax.f32 %v265, 0.0
    %v268 = vld [vmem:[#allocation9] sm:$0xff]
    %v269 = vld [vmem:[#allocation9 + $0x8] sm:$0xff]
    %v270 = vld [vmem:[#allocation9 + $0x10] sm:$0xff]
    %v271 = vld [vmem:[#allocation9 + $0x18] sm:$0xff]
    %v272 = vld [vmem:[#allocation9 + $0x20] sm:$0xff]
    %v273 = vld [vmem:[#allocation9 + $0x28] sm:$0xff]
    %v274 = vld [vmem:[#allocation9 + $0x30] sm:$0xff]
    %v275 = vld [vmem:[#allocation9 + $0x38] sm:$0xff]
    %v276 = vld [vmem:[#allocation9 + $0x40] sm:$0xff]
    %v277 = vld [vmem:[#allocation9 + $0x48] sm:$0xff]
    %v278 = vld [vmem:[#allocation9 + $0x50] sm:$0xff]
    %v279 = vld [vmem:[#allocation9 + $0x58] sm:$0xff]
    %v280 = vld [vmem:[#allocation9 + $0x60] sm:$0xff]
    %v281 = vld [vmem:[#allocation9 + $0x68] sm:$0xff]
    %v282 = vld [vmem:[#allocation9 + $0x70] sm:$0xff]
    %v283 = vld [vmem:[#allocation9 + $0x78] sm:$0xff]
    %v284 = vld [vmem:[#allocation9 + $0x80] sm:$0xff]
    %v285 = vld [vmem:[#allocation9 + $0x88] sm:$0xff]
    %v286 = vld [vmem:[#allocation9 + $0x90] sm:$0xff]
    %v287 = vld [vmem:[#allocation9 + $0x98] sm:$0xff]
    %v288 = vld [vmem:[#allocation9 + $0xa0] sm:$0xff]
    %v289 = vld [vmem:[#allocation9 + $0xa8] sm:$0xff]
    %v290 = vld [vmem:[#allocation9 + $0xb0] sm:$0xff]
    %v291 = vld [vmem:[#allocation9 + $0xb8] sm:$0xff]
    %v292 = vld [vmem:[#allocation9 + $0xc0] sm:$0xff]
    %v293 = vld [vmem:[#allocation9 + $0xc8] sm:$0xff]
    %v294 = vld [vmem:[#allocation9 + $0xd0] sm:$0xff]
    %v295 = vld [vmem:[#allocation9 + $0xd8] sm:$0xff]
    %v296 = vld [vmem:[#allocation9 + $0xe0] sm:$0xff]
    %v297 = vld [vmem:[#allocation9 + $0xe8] sm:$0xff]
    %v298 = vld [vmem:[#allocation9 + $0xf0] sm:$0xff]
    %v299 = vld [vmem:[#allocation9 + $0xf8] sm:$0xff]
    %v300 = vld [vmem:[#allocation9 + $0x100] sm:$0xff]
    %v301 = vld [vmem:[#allocation9 + $0x108] sm:$0xff]
    %v302 = vld [vmem:[#allocation9 + $0x110] sm:$0xff]
    %v303 = vld [vmem:[#allocation9 + $0x118] sm:$0xff]
    %v304 = vld [vmem:[#allocation9 + $0x120] sm:$0xff]
    %v305 = vld [vmem:[#allocation9 + $0x128] sm:$0xff]
    %v306 = vld [vmem:[#allocation9 + $0x130] sm:$0xff]
    %v307 = vld [vmem:[#allocation9 + $0x138] sm:$0xff]
    %v308 = vld [vmem:[#allocation9 + $0x140] sm:$0xff]
    %v309 = vld [vmem:[#allocation9 + $0x148] sm:$0xff]
    %v310 = vld [vmem:[#allocation9 + $0x150] sm:$0xff]
    %v311 = vld [vmem:[#allocation9 + $0x158] sm:$0xff]
    %v312 = vld [vmem:[#allocation9 + $0x160] sm:$0xff]
    %v313 = vld [vmem:[#allocation9 + $0x168] sm:$0xff]
    %v314 = vld [vmem:[#allocation9 + $0x170] sm:$0xff]
    %v315 = vld [vmem:[#allocation9 + $0x178] sm:$0xff]
    %v316 = vld [vmem:[#allocation9 + $0x180] sm:$0xff]
    %v317 = vld [vmem:[#allocation9 + $0x188] sm:$0xff]
    %v318 = vld [vmem:[#allocation9 + $0x190] sm:$0xff]
    %v319 = vld [vmem:[#allocation9 + $0x198] sm:$0xff]
    %v320 = vld [vmem:[#allocation9 + $0x1a0] sm:$0xff]
    %v321 = vld [vmem:[#allocation9 + $0x1a8] sm:$0xff]
    %v322 = vld [vmem:[#allocation9 + $0x1b0] sm:$0xff]
    %v323 = vld [vmem:[#allocation9 + $0x1b8] sm:$0xff]
    %v324 = vld [vmem:[#allocation9 + $0x1c0] sm:$0xff]
    %v325 = vld [vmem:[#allocation9 + $0x1c8] sm:$0xff]
    %v326 = vld [vmem:[#allocation9 + $0x1d0] sm:$0xff]
    %v327 = vld [vmem:[#allocation9 + $0x1d8] sm:$0xff]
    %v328 = vld [vmem:[#allocation9 + $0x1e0] sm:$0xff]
    %v329 = vld [vmem:[#allocation9 + $0x1e8] sm:$0xff]
    %v330 = vld [vmem:[#allocation9 + $0x1f0] sm:$0xff]
    %v331 = vld [vmem:[#allocation9 + $0x1f8] sm:$0xff]
    %v332 = vld [vmem:[%s6] sm:$0x3]
    %v334 = vlaneseq
    %v335 = vshrl.u32 %v334, 7
    %v336 = vsub.s32 0, %v335
    %v337 = vrot.slane %v332, %v336
    %v338 = vlaneseq
    %v339 = vshrl.u32 %v338, 7
    %v340 = vsub.s32 1, %v339
    %v341 = vrot.slane %v332, %v340
    %344 = vmatprep.subr.mxu0 %v299
    %345 = vmatpush1.msra.mxu0 %v298
    %346 = vmatprep.subr.mxu0 %v297
    %347 = vmatpush1.msra.mxu0 %v296
    %348 = vmatprep.subr.mxu0 %v295
    %349 = vmatpush1.msra.mxu0 %v294
    %350 = vmatprep.subr.mxu0 %v293
    %351 = vmatpush1.msra.mxu0 %v292
    %352 = vmatprep.subr.mxu0 %v291
    %353 = vmatpush1.msra.mxu0 %v290
    %354 = vmatprep.subr.mxu0 %v289
    %355 = vmatpush1.msra.mxu0 %v288
    %356 = vmatprep.subr.mxu0 %v287
    %357 = vmatpush1.msra.mxu0 %v286
    %358 = vmatprep.subr.mxu0 %v285
    %359 = vmatpush1.msra.mxu0 %v284
    %360 = vmatprep.subr.mxu0 %v283
    %361 = vmatpush1.msra.mxu0 %v282
    %362 = vmatprep.subr.mxu0 %v281
    %363 = vmatpush1.msra.mxu0 %v280
    %364 = vmatprep.subr.mxu0 %v279
    %365 = vmatpush1.msra.mxu0 %v278
    %366 = vmatprep.subr.mxu0 %v277
    %367 = vmatpush1.msra.mxu0 %v276
    %368 = vmatprep.subr.mxu0 %v275
    %369 = vmatpush1.msra.mxu0 %v274
    %370 = vmatprep.subr.mxu0 %v273
    %371 = vmatpush1.msra.mxu0 %v272
    %372 = vmatprep.subr.mxu0 %v271
    %373 = vmatpush1.msra.mxu0 %v270
    %374 = vmatprep.subr.mxu0 %v269
    %375 = vmatpush1.msra.mxu0 %v268
    %376 = vmatprep.subr.mxu0 %v331
    %377 = vmatpush2.msra.mxu0 %v330
    %378 = vmatprep.subr.mxu0 %v329
    %379 = vmatpush2.msra.mxu0 %v328
    %380 = vmatprep.subr.mxu0 %v327
    %381 = vmatpush2.msra.mxu0 %v326
    %382 = vmatprep.subr.mxu0 %v325
    %383 = vmatpush2.msra.mxu0 %v324
    %384 = vmatprep.subr.mxu0 %v323
    %385 = vmatpush2.msra.mxu0 %v322
    %386 = vmatprep.subr.mxu0 %v321
    %387 = vmatpush2.msra.mxu0 %v320
    %388 = vmatprep.subr.mxu0 %v319
    %389 = vmatpush2.msra.mxu0 %v318
    %390 = vmatprep.subr.mxu0 %v317
    %391 = vmatpush2.msra.mxu0 %v316
    %392 = vmatprep.subr.mxu0 %v315
    %393 = vmatpush2.msra.mxu0 %v314
    %394 = vmatprep.subr.mxu0 %v313
    %395 = vmatpush2.msra.mxu0 %v312
    %396 = vmatprep.subr.mxu0 %v311
    %397 = vmatpush2.msra.mxu0 %v310
    %398 = vmatprep.subr.mxu0 %v309
    %399 = vmatpush2.msra.mxu0 %v308
    %400 = vmatprep.subr.mxu0 %v307
    %401 = vmatpush2.msra.mxu0 %v306
    %402 = vmatprep.subr.mxu0 %v305
    %403 = vmatpush2.msra.mxu0 %v304
    %404 = vmatprep.subr.mxu0 %v303
    %405 = vmatpush2.msra.mxu0 %v302
    %406 = vmatprep.subr.mxu0 %v301
    %407 = vmatpush2.msra.mxu0 %v300
    %408 = vmatprep.mubr.f32.mxu0 %v267
    %409 = vmatmul.mubr.f32.gmra.mxu0 %v266
    %v410 = vpop.f32.mrf.mxu0
    %v411 = vadd.f32 %v337, %v410
    %v412 = vpop.f32.mrf.mxu0
    %v413 = vadd.f32 %v341, %v412
    %414 = vdwg.mxu0
    %v415 = vmax.f32 %v411, 0.0
    %v416 = vmax.f32 %v413, 0.0
    %v417 = vld [vmem:[%s7] sm:$0x3]
    %v419 = vlaneseq
    %v420 = vshrl.u32 %v419, 7
    %v421 = vsub.s32 0, %v420
    %v422 = vrot.slane %v417, %v421
    %v423 = vlaneseq
    %v424 = vshrl.u32 %v423, 7
    %v425 = vsub.s32 1, %v424
    %v426 = vrot.slane %v417, %v425
    %v429 = vmul.f32 %v415, %v422
    %v430 = vmul.f32 %v416, %v426
    %431 = vadd.xlane.f32.xlu0 %v429
    %v432 = vpop.xlane.xlu0 %431
    %433 = vadd.xlane.f32.xlu0 %v430
    %v434 = vpop.xlane.xlu0 %433
    %vm435 = vcmask 7168
    %v436 = vsel %vm435, %v432, %v434
    %v437 = vld [vmem:[%s8] sm:$0x1]
    %v439 = vlaneseq
    %v440 = vshrl.u32 %v439, 7
    %v441 = vsub.s32 0, %v440
    %v442 = vrot.slane %v437, %v441
    %v444 = vadd.f32 %v436, %v442
    %vm445 = vcmask 15360
    %446 = vst.msk [vmem:[%s9] sm:$0xff] %vm445, %v444
    // Predicated region
    $region58: #{value_network_forward.1} parent=1 // pred_check
      _
    $region59: #{value_network_forward.1} parent=1 // pred_check_branch
      %448 = sbr.rel (0) target = $region61
    $region60: #{value_network_forward.1} parent=1 // pred_region
      _
    $region61: #{value_network_forward.1} parent=1 // pred_fallthru
      _
    // Predicated region
    $region62: #{value_network_forward.1} parent=1 // pred_check
      _
    $region63: #{value_network_forward.1} parent=1 // pred_check_branch
      %450 = sbr.rel (0) target = $region65
    $region64: #{value_network_forward.1} parent=1 // pred_region
      _
    $region65: #{value_network_forward.1} parent=1 // pred_fallthru
      _
    %451 = vsyncpa [#allocation3], 1
    %452 = vsyncpa [#allocation5], 1
    %453 = vsyncpa [#allocation8], 1

</llo_original>
